<compile_context>
chip_gen: v6e
topology: v6e:2x2x1
jax: 0.10.0
libtpu: 0.0.40
codegen_flags: <defaults>
</compile_context>

<pallas_src>
import functools

import jax
import jax.numpy as jnp
import numpy as np
from jax.experimental import pallas as pl
from jax.experimental.pallas import tpu as pltpu


def _cdiv(a, b):
    return -(-a // b)


def _round_up(x, m):
    return _cdiv(x, m) * m


def _vmem_budget():
    """(scoped-VMEM request, physical VMEM) — ~half of physical per generation."""
    phys = 64 << 20                      # conservative fallback (v7x physical)
    try:
        cap = getattr(pltpu.get_tpu_info(), "vmem_capacity_bytes", None)
        if cap:
            phys = int(cap)
    except Exception:
        pass
    return min(phys // 2, 64 << 20), phys   # ~64 MiB v5e/v6e, ~32 MiB v7x


def _plan_tiles(L, M, rep, T, sp, sg, sv, lane_tile=None, row_tile=None):
    """Pick (row_tile, lane_tile, vmem_limit_bytes).

    lane_tile / row_tile overrides are for testing; a row_tile < M must be a
    multiple of 8*rep (so both the data and the valid blocks stay 8-aligned).
    """
    MIN_STEPS = 8     # target >= 8 grid steps (pipelining + v7x megacore)
    MIN_LANES = 512   # never shrink lane tiles below this; tile rows instead

    vmem_limit, phys = _vmem_budget()
    budget = vmem_limit - (2 << 20)      # headroom

    # dtype-aware bytes per (row x lane) column of one tile:
    #   2x double-buffered pipelined blocks (T preds + gt + valid + f32 out)
    #   + ~4 in-kernel f32 temporaries (gt cast, diff, acc, masked product).
    k = 2.0 * (T * sp + sg + float(sv) / rep + 4.0) + 4 * 4.0

    # ---- row (sublane) tile ------------------------------------------------
    if row_tile is not None:
        m_tile = int(row_tile)
    else:
        m_tile = M
        min_lanes = min(MIN_LANES, _round_up(L, 128))
        if k * M * min_lanes > budget:
            # Full-M rows would force lane tiles below MIN_LANES: tile rows.
            unit = 8 * rep                       # keeps valid blocks 8-row aligned
            rows_cap = int(budget // (k * min_lanes))
            m_tile = max(unit, (rows_cap // unit) * unit)
            if rep > 1:
                m_tile = min(m_tile, 64 * rep)   # bound in-kernel group unroll
            if m_tile >= M:
                m_tile = M

    # ---- lane tile -----------------------------------------------------------
    if lane_tile is not None:
        l_tile = int(lane_tile)
    else:
        steps_cap = max(MIN_LANES, _round_up(_cdiv(L, MIN_STEPS), 128))
        vmem_cap = (int(budget // (k * m_tile)) // 128) * 128
        l_tile = max(128, min(steps_cap, vmem_cap))
    if l_tile >= L:
        l_tile = L          # single full-width block (lane dim == array dim)

    # Make sure the scoped-VMEM request covers the chosen tiles (+ headroom).
    need = int(k * m_tile * l_tile) + (2 << 20)
    vmem_limit = max(vmem_limit, min(need, max(phys - (4 << 20), 1 << 20)))
    return int(m_tile), int(l_tile), int(vmem_limit)


def _seq_loss_kernel(T, rep, weights, loss_type, valid_ref, gt_ref, *rest):
    """One grid step = one (rows, lanes) tile; the T-term sum is fully unrolled."""
    pred_refs = rest[:T]
    out_ref = rest[T]

    gt = gt_ref[...].astype(jnp.float32)

    acc = None
    for i in range(T):
        d = pred_refs[i][...].astype(jnp.float32) - gt
        il = jnp.abs(d) if loss_type == "l1" else d * d
        term = weights[i] * il            # weights are pre-normalized constants
        acc = term if acc is None else acc + term

    if rep == 1:
        # valid has one row per output row: single full-block multiply + store.
        out_ref[...] = (acc * valid_ref[...].astype(jnp.float32)).astype(out_ref.dtype)
    else:
        # valid has one row per batch group of `rep` channel rows: apply the
        # mask and store per group so no full (rows, lanes) broadcasted-mask
        # temporary (or sublane concatenate) is ever materialized.
        rows = out_ref.shape[0]
        for g in range(rows // rep):
            r0 = g * rep
            vg = valid_ref[g, :].astype(jnp.float32)          # (lanes,)
            out_ref[r0:r0 + rep, :] = (acc[r0:r0 + rep, :] * vg).astype(out_ref.dtype)


def sequence_loss(preds, gt, valid, gamma=0.8, loss_type="l1",
                  lane_tile=None, row_tile=None):
    """preds: list of (N,C,H,W); gt: (N,C,H,W); valid: (N,1,H,W) or (N,C,H,W).

    Returns the elementwise weighted-average loss, shape (N, C, H, W), float32.
    """
    assert loss_type in ("l1", "l2")
    T = len(preds)
    assert T >= 1
    N, C, H, W = gt.shape
    M, L = N * C, H * W

    # valid kept at its logical row count; broadcast across channels in-kernel.
    valid2 = jnp.reshape(valid, (-1, L))
    n_mask_rows = valid2.shape[0]
    assert M % n_mask_rows == 0, "valid must be (N,1,H,W) or (N,C,H,W)"
    rep = M // n_mask_rows

    gt2 = jnp.reshape(gt, (M, L))                 # reshapes only — no padding
    preds2 = [jnp.reshape(p, (M, L)) for p in preds]

    sp = jnp.dtype(preds[0].dtype).itemsize
    sg = jnp.dtype(gt.dtype).itemsize
    sv = jnp.dtype(valid.dtype).itemsize
    m_tile, l_tile, vmem_limit = _plan_tiles(
        L, M, rep, T, sp, sg, sv, lane_tile=lane_tile, row_tile=row_tile)
    v_rows = m_tile // rep
    grid = (_cdiv(M, m_tile), _cdiv(L, l_tile))   # ragged last blocks are fine

    # Pre-normalized weights (static Python constants baked into the kernel).
    w = [gamma ** (T - 1 - i) for i in range(T)]
    total = float(sum(w))
    w_norm = tuple(float(wi / total) for wi in w)

    kernel = functools.partial(_seq_loss_kernel, T, rep, w_norm, loss_type)

    big_spec = pl.BlockSpec((m_tile, l_tile), lambda i, j: (i, j))
    in_specs = ([pl.BlockSpec((v_rows, l_tile), lambda i, j: (i, j)), big_spec]
                + [big_spec] * T)

    out2 = pl.pallas_call(
        kernel,
        out_shape=jax.ShapeDtypeStruct((M, L), jnp.float32),
        grid=grid,
        in_specs=in_specs,
        out_specs=big_spec,
        compiler_params=pltpu.CompilerParams(
            dimension_semantics=("parallel", "parallel"),
            vmem_limit_bytes=vmem_limit,
        ),
    )(valid2, gt2, *preds2)

    return out2.reshape(N, C, H, W)


def sequence_loss_ref(preds, gt, valid, gamma=0.8, loss_type="l1"):
    """Pure-JAX reference mirroring the PyTorch forward."""
    n = len(preds)
    loss = 0.0
    weight = 0.0
    for i in range(n):
        w = gamma ** (n - i - 1)
        d = preds[i].astype(jnp.float32) - gt.astype(jnp.float32)
        il = jnp.abs(d) if loss_type == "l1" else jnp.square(d)
        il = il * valid.astype(jnp.float32)
        loss = loss + w * il
        weight = weight + w
    return loss / weight


if __name__ == "__main__":
    root = jax.random.PRNGKey(0)

    def make_case(key, N, C, H, W, T, valid_shape, dtype):
        ks = jax.random.split(key, T + 2)
        preds = [jax.random.normal(ks[i], (N, C, H, W), dtype=jnp.float32).astype(dtype)
                 for i in range(T)]
        gt = jax.random.normal(ks[T], (N, C, H, W), dtype=jnp.float32).astype(dtype)
        valid = (jax.random.uniform(ks[T + 1], valid_shape) > 0.2).astype(jnp.float32)
        return preds, gt, valid

    cases = [
        # name,          N  C  H   W   T  valid_shape       dtype        lane_t row_t losses
        ("raft_small",   2, 2, 16, 16, 6, (2, 1, 16, 16),   jnp.float32,  None, None, ("l1", "l2")),
        ("raft_bf16",    2, 2, 16, 16, 6, (2, 1, 16, 16),   jnp.bfloat16, None, None, ("l1",)),
        ("auto_grid",    2, 2, 64, 64, 4, (2, 1, 64, 64),   jnp.float32,  None, None, ("l1",)),
        ("ragged_lanes", 2, 2, 16, 20, 3, (2, 1, 16, 20),   jnp.float32,  128,  None, ("l1",)),
        ("row_tiled",    5, 4, 16, 16, 3, (5, 4, 16, 16),   jnp.float32,  128,  8,    ("l1",)),
    ]

    for idx, (name, N, C, H, W, T, vshape, dtype, lt_, rt_, losses) in enumerate(cases):
        preds, gt, valid = make_case(jax.random.fold_in(root, idx),
                                     N, C, H, W, T, vshape, dtype)
        for loss_type in losses:
            out = sequence_loss(preds, gt, valid, gamma=0.8, loss_type=loss_type,
                                lane_tile=lt_, row_tile=rt_)
            out = jax.block_until_ready(out)
            ref = sequence_loss_ref(preds, gt, valid, gamma=0.8, loss_type=loss_type)
            np.testing.assert_allclose(np.asarray(out), np.asarray(ref),
                                       rtol=1e-5, atol=1e-5,
                                       err_msg=f"case={name} loss={loss_type}")

    print("KERNEL_OK")
</pallas_src>

<mosaic_0001>
module attributes {stable_mosaic.version = 11 : i64} {
  func.func @_seq_loss_kernel(%arg0: i32, %arg1: i32, %arg2: memref<2x256xf32, #tpu.memory_space<vmem>>, %arg3: memref<4x256xf32, #tpu.memory_space<vmem>>, %arg4: memref<4x256xf32, #tpu.memory_space<vmem>>, %arg5: memref<4x256xf32, #tpu.memory_space<vmem>>, %arg6: memref<4x256xf32, #tpu.memory_space<vmem>>, %arg7: memref<4x256xf32, #tpu.memory_space<vmem>>, %arg8: memref<4x256xf32, #tpu.memory_space<vmem>>, %arg9: memref<4x256xf32, #tpu.memory_space<vmem>>, %arg10: memref<4x256xf32, #tpu.memory_space<vmem>>) attributes {dimension_semantics = [#tpu.dimension_semantics<parallel>, #tpu.dimension_semantics<parallel>], iteration_bounds = array<i64: 1, 1>, scalar_prefetch = 0 : i64, scratch_operands = 0 : i64, tpu.core_type = #tpu.core_type<tc>, window_params = [{transform_indices = @transform_0, window_bounds = array<i64: 2, 256>}, {transform_indices = @transform_1, window_bounds = array<i64: 4, 256>}, {transform_indices = @transform_2, window_bounds = array<i64: 4, 256>}, {transform_indices = @transform_3, window_bounds = array<i64: 4, 256>}, {transform_indices = @transform_4, window_bounds = array<i64: 4, 256>}, {transform_indices = @transform_5, window_bounds = array<i64: 4, 256>}, {transform_indices = @transform_6, window_bounds = array<i64: 4, 256>}, {transform_indices = @transform_7, window_bounds = array<i64: 4, 256>}, {transform_indices = @transform_8, window_bounds = array<i64: 4, 256>}]} {
    %c0 = arith.constant 0 : index
    %c0_0 = arith.constant 0 : index
    %0 = vector.load %arg3[%c0, %c0_0] : memref<4x256xf32, #tpu.memory_space<vmem>>, vector<4x256xf32>
    %c0_1 = arith.constant 0 : index
    %c0_2 = arith.constant 0 : index
    %1 = vector.load %arg4[%c0_1, %c0_2] : memref<4x256xf32, #tpu.memory_space<vmem>>, vector<4x256xf32>
    %2 = arith.subf %1, %0 : vector<4x256xf32>
    %3 = math.absf %2 : vector<4x256xf32>
    %cst = arith.constant 0.0888194963 : f32
    %4 = vector.broadcast %cst : f32 to vector<4x256xf32>
    %5 = arith.mulf %4, %3 : vector<4x256xf32>
    %c0_3 = arith.constant 0 : index
    %c0_4 = arith.constant 0 : index
    %6 = vector.load %arg5[%c0_3, %c0_4] : memref<4x256xf32, #tpu.memory_space<vmem>>, vector<4x256xf32>
    %7 = arith.subf %6, %0 : vector<4x256xf32>
    %8 = math.absf %7 : vector<4x256xf32>
    %cst_5 = arith.constant 0.111024372 : f32
    %9 = vector.broadcast %cst_5 : f32 to vector<4x256xf32>
    %10 = arith.mulf %9, %8 : vector<4x256xf32>
    %11 = arith.addf %5, %10 : vector<4x256xf32>
    %c0_6 = arith.constant 0 : index
    %c0_7 = arith.constant 0 : index
    %12 = vector.load %arg6[%c0_6, %c0_7] : memref<4x256xf32, #tpu.memory_space<vmem>>, vector<4x256xf32>
    %13 = arith.subf %12, %0 : vector<4x256xf32>
    %14 = math.absf %13 : vector<4x256xf32>
    %cst_8 = arith.constant 0.13878046 : f32
    %15 = vector.broadcast %cst_8 : f32 to vector<4x256xf32>
    %16 = arith.mulf %15, %14 : vector<4x256xf32>
    %17 = arith.addf %11, %16 : vector<4x256xf32>
    %c0_9 = arith.constant 0 : index
    %c0_10 = arith.constant 0 : index
    %18 = vector.load %arg7[%c0_9, %c0_10] : memref<4x256xf32, #tpu.memory_space<vmem>>, vector<4x256xf32>
    %19 = arith.subf %18, %0 : vector<4x256xf32>
    %20 = math.absf %19 : vector<4x256xf32>
    %cst_11 = arith.constant 0.173475578 : f32
    %21 = vector.broadcast %cst_11 : f32 to vector<4x256xf32>
    %22 = arith.mulf %21, %20 : vector<4x256xf32>
    %23 = arith.addf %17, %22 : vector<4x256xf32>
    %c0_12 = arith.constant 0 : index
    %c0_13 = arith.constant 0 : index
    %24 = vector.load %arg8[%c0_12, %c0_13] : memref<4x256xf32, #tpu.memory_space<vmem>>, vector<4x256xf32>
    %25 = arith.subf %24, %0 : vector<4x256xf32>
    %26 = math.absf %25 : vector<4x256xf32>
    %cst_14 = arith.constant 0.216844484 : f32
    %27 = vector.broadcast %cst_14 : f32 to vector<4x256xf32>
    %28 = arith.mulf %27, %26 : vector<4x256xf32>
    %29 = arith.addf %23, %28 : vector<4x256xf32>
    %c0_15 = arith.constant 0 : index
    %c0_16 = arith.constant 0 : index
    %30 = vector.load %arg9[%c0_15, %c0_16] : memref<4x256xf32, #tpu.memory_space<vmem>>, vector<4x256xf32>
    %31 = arith.subf %30, %0 : vector<4x256xf32>
    %32 = math.absf %31 : vector<4x256xf32>
    %cst_17 = arith.constant 0.271055609 : f32
    %33 = vector.broadcast %cst_17 : f32 to vector<4x256xf32>
    %34 = arith.mulf %33, %32 : vector<4x256xf32>
    %35 = arith.addf %29, %34 : vector<4x256xf32>
    %c0_18 = arith.constant 0 : index
    %c0_19 = arith.constant 0 : index
    %36 = vector.load %arg2[%c0_18, %c0_19] : memref<2x256xf32, #tpu.memory_space<vmem>>, vector<1x256xf32>
    %37 = vector.shape_cast %36 : vector<1x256xf32> to vector<256xf32>
    %38 = vector.extract_strided_slice %35 {offsets = [0, 0], sizes = [2, 256], strides = [1, 1]} : vector<4x256xf32> to vector<2x256xf32>
    %39 = vector.shape_cast %37 : vector<256xf32> to vector<1x256xf32>
    %40 = vector.broadcast %39 : vector<1x256xf32> to vector<2x256xf32>
    %41 = arith.mulf %38, %40 : vector<2x256xf32>
    %c0_20 = arith.constant 0 : index
    %c0_21 = arith.constant 0 : index
    %42 = vector.load %arg10[%c0_20, %c0_21] : memref<4x256xf32, #tpu.memory_space<vmem>>, vector<2x256xf32>
    tpu.vector_store %arg10[%c0_20, %c0_21], %41 {strides = array<i32>} : memref<4x256xf32, #tpu.memory_space<vmem>>, vector<2x256xf32>,
    %c1 = arith.constant 1 : index
    %c0_22 = arith.constant 0 : index
    %43 = vector.load %arg2[%c1, %c0_22] : memref<2x256xf32, #tpu.memory_space<vmem>>, vector<1x256xf32>
    %44 = vector.shape_cast %43 : vector<1x256xf32> to vector<256xf32>
    %45 = vector.extract_strided_slice %35 {offsets = [2, 0], sizes = [2, 256], strides = [1, 1]} : vector<4x256xf32> to vector<2x256xf32>
    %46 = vector.shape_cast %44 : vector<256xf32> to vector<1x256xf32>
    %47 = vector.broadcast %46 : vector<1x256xf32> to vector<2x256xf32>
    %48 = arith.mulf %45, %47 : vector<2x256xf32>
    %c2 = arith.constant 2 : index
    %c0_23 = arith.constant 0 : index
    %49 = vector.load %arg10[%c2, %c0_23] : memref<4x256xf32, #tpu.memory_space<vmem>>, vector<2x256xf32>
    tpu.vector_store %arg10[%c2, %c0_23], %48 {strides = array<i32>} : memref<4x256xf32, #tpu.memory_space<vmem>>, vector<2x256xf32>,
    return
  }
  func.func @transform_0(%arg0: i32, %arg1: i32) -> (i32, i32) {
    %c0_i32 = arith.constant 0 : i32
    return %arg0, %arg1 : i32, i32
  }
  func.func @transform_1(%arg0: i32, %arg1: i32) -> (i32, i32) {
    %c0_i32 = arith.constant 0 : i32
    return %arg0, %arg1 : i32, i32
  }
  func.func @transform_2(%arg0: i32, %arg1: i32) -> (i32, i32) {
    %c0_i32 = arith.constant 0 : i32
    return %arg0, %arg1 : i32, i32
  }
  func.func @transform_3(%arg0: i32, %arg1: i32) -> (i32, i32) {
    %c0_i32 = arith.constant 0 : i32
    return %arg0, %arg1 : i32, i32
  }
  func.func @transform_4(%arg0: i32, %arg1: i32) -> (i32, i32) {
    %c0_i32 = arith.constant 0 : i32
    return %arg0, %arg1 : i32, i32
  }
  func.func @transform_5(%arg0: i32, %arg1: i32) -> (i32, i32) {
    %c0_i32 = arith.constant 0 : i32
    return %arg0, %arg1 : i32, i32
  }
  func.func @transform_6(%arg0: i32, %arg1: i32) -> (i32, i32) {
    %c0_i32 = arith.constant 0 : i32
    return %arg0, %arg1 : i32, i32
  }
  func.func @transform_7(%arg0: i32, %arg1: i32) -> (i32, i32) {
    %c0_i32 = arith.constant 0 : i32
    return %arg0, %arg1 : i32, i32
  }
  func.func @transform_8(%arg0: i32, %arg1: i32) -> (i32, i32) {
    %c0_i32 = arith.constant 0 : i32
    return %arg0, %arg1 : i32, i32
  }
}

</mosaic_0001>

<llo_original>
// kernel: tpu_custom_call.1
$region0: #{tpu_custom_call.1}
  #allocation0 [shape = 'u32[]', space=smem, size = 0x4, offset = 0x4, fixed_abs, tag = 'smem constant byte address 0x4 - core index']
  #allocation1 [shape = 'u32[144,128]{1,0:T(1,128)}', space=vmem, size = 0x12000, scoped, tag = 'internal scratch']
  %s0 = inlined_call_operand.hbm [shape: f32[2,256], index: 0, kind: input, shape index: {}]
  %s1 = inlined_call_operand.hbm [shape: f32[4,256], index: 1, kind: input, shape index: {}]
  %s2 = inlined_call_operand.hbm [shape: f32[4,256], index: 2, kind: input, shape index: {}]
  %s3 = inlined_call_operand.hbm [shape: f32[4,256], index: 3, kind: input, shape index: {}]
  %s4 = inlined_call_operand.hbm [shape: f32[4,256], index: 4, kind: input, shape index: {}]
  %s5 = inlined_call_operand.vmem [shape: f32[4,256], index: 5, kind: input, shape index: {}]
  %s6 = inlined_call_operand.hbm [shape: f32[4,256], index: 6, kind: input, shape index: {}]
  %s7 = inlined_call_operand.hbm [shape: f32[4,256], index: 7, kind: input, shape index: {}]
  %s8 = inlined_call_operand.hbm [shape: f32[4,256], index: 8, kind: output, shape index: {}]
  %s9 = sld [smem:[#allocation0]]
  $region70: #{tpu_custom_call.1} parent=0
    _
  %s11 = ssub.s32 1, %s9
  %s12 = scalar_select 0, %s11, %s9
  $region1: #{tpu_custom_call.1} parent=0
    #allocation2 [shape = 'u8[2048]{0}', space=vmem, size = 0x800, scoped, tag = 'input window, operand 0, single buffered']
    #allocation3 [shape = 's32[1]{0}', space=sflag, size = 0x4, scoped, tag = 'scoped memory for tpu_custom_call.1']
    #allocation4 [shape = 's32[1]{0}', space=sflag, size = 0x4, scoped, tag = 'scoped memory for tpu_custom_call.1']
    #allocation5 [shape = 'u8[4096]{0}', space=vmem, size = 0x1000, scoped, tag = 'input window, operand 1, single buffered']
    #allocation6 [shape = 's32[1]{0}', space=sflag, size = 0x4, scoped, tag = 'scoped memory for tpu_custom_call.1']
    #allocation7 [shape = 'u8[4096]{0}', space=vmem, size = 0x1000, scoped, tag = 'input window, operand 2, single buffered']
    #allocation8 [shape = 'u8[4096]{0}', space=vmem, size = 0x1000, scoped, tag = 'input window, operand 3, single buffered']
    #allocation9 [shape = 's32[1]{0}', space=sflag, size = 0x4, scoped, tag = 'scoped memory for tpu_custom_call.1']
    #allocation10 [shape = 'u8[4096]{0}', space=vmem, size = 0x1000, scoped, tag = 'input window, operand 4, single buffered']
    #allocation11 [shape = 'u8[4096]{0}', space=vmem, size = 0x1000, scoped, tag = 'input window, operand 6, single buffered']
    #allocation12 [shape = 's32[1]{0}', space=sflag, size = 0x4, scoped, tag = 'scoped memory for tpu_custom_call.1']
    #allocation13 [shape = 'u8[4096]{0}', space=vmem, size = 0x1000, scoped, tag = 'input window, operand 7, single buffered']
    #allocation14 [shape = 'u8[4096]{0}', space=vmem, size = 0x1000, scoped, tag = 'output window, operand 0, single buffered']
    %13 = vsyncpa [#allocation3], 0
    %14 = vsyncpa [#allocation6], 0
    %15 = vsyncpa [#allocation9], 0
    %16 = vsyncpa [#allocation12], 0
    %17 = vsyncpa [#allocation4], 0
    // Predicated region
    $region2: #{tpu_custom_call.1} parent=1 // pred_check
      _
    $region3: #{tpu_custom_call.1} parent=1 // pred_check_branch
      %19 = sbr.rel (0) target = $region5
    $region4: #{tpu_custom_call.1} parent=1 // pred_region
      %s21 = ssub.s32 64, 64
      %22 = vsyncadd [#allocation3], %s21
      %s24 = sshll.u32 [#allocation2], 4
      %s25 = int_to_ptr.vmem [resolvable:$true] %s24
      %27 = dma.hbm_to_vmem [thread:$0]  %s0, 64, %s25, [#allocation3]
    $region5: #{tpu_custom_call.1} parent=1 // pred_fallthru
      _
    // Predicated region
    $region6: #{tpu_custom_call.1} parent=1 // pred_check
      _
    $region7: #{tpu_custom_call.1} parent=1 // pred_check_branch
      %29 = sbr.rel (0) target = $region9
    $region8: #{tpu_custom_call.1} parent=1 // pred_region
      %s31 = ssub.s32 128, 128
      %32 = vsyncadd [#allocation6], %s31
      %s34 = sshll.u32 [#allocation5], 4
      %s35 = int_to_ptr.vmem [resolvable:$true] %s34
      %37 = dma.hbm_to_vmem [thread:$0]  %s1, 128, %s35, [#allocation6]
    $region9: #{tpu_custom_call.1} parent=1 // pred_fallthru
      _
    // Predicated region
    $region10: #{tpu_custom_call.1} parent=1 // pred_check
      _
    $region11: #{tpu_custom_call.1} parent=1 // pred_check_branch
      %39 = sbr.rel (0) target = $region13
    $region12: #{tpu_custom_call.1} parent=1 // pred_region
      %s41 = ssub.s32 128, 128
      %42 = vsyncadd [#allocation6], %s41
      %s44 = sshll.u32 [#allocation7], 4
      %s45 = int_to_ptr.vmem [resolvable:$true] %s44
      %47 = dma.hbm_to_vmem [thread:$0]  %s2, 128, %s45, [#allocation6]
    $region13: #{tpu_custom_call.1} parent=1 // pred_fallthru
      _
    // Predicated region
    $region14: #{tpu_custom_call.1} parent=1 // pred_check
      _
    $region15: #{tpu_custom_call.1} parent=1 // pred_check_branch
      %49 = sbr.rel (0) target = $region17
    $region16: #{tpu_custom_call.1} parent=1 // pred_region
      %s51 = ssub.s32 128, 128
      %52 = vsyncadd [#allocation9], %s51
      %s54 = sshll.u32 [#allocation8], 4
      %s55 = int_to_ptr.vmem [resolvable:$true] %s54
      %57 = dma.hbm_to_vmem [thread:$0]  %s3, 128, %s55, [#allocation9]
    $region17: #{tpu_custom_call.1} parent=1 // pred_fallthru
      _
    // Predicated region
    $region18: #{tpu_custom_call.1} parent=1 // pred_check
      _
    $region19: #{tpu_custom_call.1} parent=1 // pred_check_branch
      %59 = sbr.rel (0) target = $region21
    $region20: #{tpu_custom_call.1} parent=1 // pred_region
      %s61 = ssub.s32 128, 128
      %62 = vsyncadd [#allocation9], %s61
      %s64 = sshll.u32 [#allocation10], 4
      %s65 = int_to_ptr.vmem [resolvable:$true] %s64
      %67 = dma.hbm_to_vmem [thread:$0]  %s4, 128, %s65, [#allocation9]
    $region21: #{tpu_custom_call.1} parent=1 // pred_fallthru
      _
    // Predicated region
    $region22: #{tpu_custom_call.1} parent=1 // pred_check
      _
    $region23: #{tpu_custom_call.1} parent=1 // pred_check_branch
      %69 = sbr.rel (0) target = $region25
    $region24: #{tpu_custom_call.1} parent=1 // pred_region
      _
    $region25: #{tpu_custom_call.1} parent=1 // pred_fallthru
      _
    // Predicated region
    $region26: #{tpu_custom_call.1} parent=1 // pred_check
      _
    $region27: #{tpu_custom_call.1} parent=1 // pred_check_branch
      %71 = sbr.rel (0) target = $region29
    $region28: #{tpu_custom_call.1} parent=1 // pred_region
      %s73 = ssub.s32 128, 128
      %74 = vsyncadd [#allocation12], %s73
      %s76 = sshll.u32 [#allocation11], 4
      %s77 = int_to_ptr.vmem [resolvable:$true] %s76
      %79 = dma.hbm_to_vmem [thread:$0]  %s6, 128, %s77, [#allocation12]
    $region29: #{tpu_custom_call.1} parent=1 // pred_fallthru
      _
    // Predicated region
    $region30: #{tpu_custom_call.1} parent=1 // pred_check
      _
    $region31: #{tpu_custom_call.1} parent=1 // pred_check_branch
      %81 = sbr.rel (0) target = $region33
    $region32: #{tpu_custom_call.1} parent=1 // pred_region
      %s83 = ssub.s32 128, 128
      %84 = vsyncadd [#allocation12], %s83
      %s86 = sshll.u32 [#allocation13], 4
      %s87 = int_to_ptr.vmem [resolvable:$true] %s86
      %89 = dma.hbm_to_vmem [thread:$0]  %s7, 128, %s87, [#allocation12]
    $region33: #{tpu_custom_call.1} parent=1 // pred_fallthru
      _
    // Predicated region
    $region34: #{tpu_custom_call.1} parent=1 // pred_check
      _
    $region35: #{tpu_custom_call.1} parent=1 // pred_check_branch
      %91 = sbr.rel (0) target = $region37
    $region36: #{tpu_custom_call.1} parent=1 // pred_region
      %92 = dma.done [#allocation3], 64
    $region37: #{tpu_custom_call.1} parent=1 // pred_fallthru
      _
    // Predicated region
    $region38: #{tpu_custom_call.1} parent=1 // pred_check
      _
    $region39: #{tpu_custom_call.1} parent=1 // pred_check_branch
      %94 = sbr.rel (0) target = $region41
    $region40: #{tpu_custom_call.1} parent=1 // pred_region
      %95 = dma.done [#allocation6], 128
    $region41: #{tpu_custom_call.1} parent=1 // pred_fallthru
      _
    // Predicated region
    $region42: #{tpu_custom_call.1} parent=1 // pred_check
      _
    $region43: #{tpu_custom_call.1} parent=1 // pred_check_branch
      %97 = sbr.rel (0) target = $region45
    $region44: #{tpu_custom_call.1} parent=1 // pred_region
      %98 = dma.done [#allocation6], 128
    $region45: #{tpu_custom_call.1} parent=1 // pred_fallthru
      _
    // Predicated region
    $region46: #{tpu_custom_call.1} parent=1 // pred_check
      _
    $region47: #{tpu_custom_call.1} parent=1 // pred_check_branch
      %100 = sbr.rel (0) target = $region49
    $region48: #{tpu_custom_call.1} parent=1 // pred_region
      %101 = dma.done [#allocation9], 128
    $region49: #{tpu_custom_call.1} parent=1 // pred_fallthru
      _
    // Predicated region
    $region50: #{tpu_custom_call.1} parent=1 // pred_check
      _
    $region51: #{tpu_custom_call.1} parent=1 // pred_check_branch
      %103 = sbr.rel (0) target = $region53
    $region52: #{tpu_custom_call.1} parent=1 // pred_region
      %104 = dma.done [#allocation9], 128
    $region53: #{tpu_custom_call.1} parent=1 // pred_fallthru
      _
    // Predicated region
    $region54: #{tpu_custom_call.1} parent=1 // pred_check
      _
    $region55: #{tpu_custom_call.1} parent=1 // pred_check_branch
      %106 = sbr.rel (0) target = $region57
    $region56: #{tpu_custom_call.1} parent=1 // pred_region
      %107 = dma.done [#allocation12], 128
    $region57: #{tpu_custom_call.1} parent=1 // pred_fallthru
      _
    // Predicated region
    $region58: #{tpu_custom_call.1} parent=1 // pred_check
      _
    $region59: #{tpu_custom_call.1} parent=1 // pred_check_branch
      %109 = sbr.rel (0) target = $region61
    $region60: #{tpu_custom_call.1} parent=1 // pred_region
      %110 = dma.done [#allocation12], 128
    $region61: #{tpu_custom_call.1} parent=1 // pred_fallthru
      _
    %v111 = vld [vmem:[#allocation5] sm:$0xff]
    %v112 = vld [vmem:[#allocation7] sm:$0xff]
    %v113 = vsub.f32 %v112, %v111
    %v114 = vand.u32 2147483647, %v113
    %v115 = vmul.f32 %v114, 0.0888195
    %v116 = vld [vmem:[#allocation8] sm:$0xff]
    %v117 = vsub.f32 %v116, %v111
    %v118 = vand.u32 2147483647, %v117
    %v119 = vmul.f32 %v118, 0.11102437
    %v120 = vadd.f32 %v115, %v119
    %v121 = vld [vmem:[#allocation10] sm:$0xff]
    %v122 = vsub.f32 %v121, %v111
    %v123 = vand.u32 2147483647, %v122
    %v124 = vmul.f32 %v123, 0.13878046
    %v125 = vadd.f32 %v120, %v124
    %v126 = vld [vmem:[%s5] sm:$0xff]
    %v127 = vsub.f32 %v126, %v111
    %v128 = vand.u32 2147483647, %v127
    %v129 = vmul.f32 %v128, 0.17347558
    %v130 = vadd.f32 %v125, %v129
    %v131 = vld [vmem:[#allocation11] sm:$0xff]
    %v132 = vsub.f32 %v131, %v111
    %v133 = vand.u32 2147483647, %v132
    %v134 = vmul.f32 %v133, 0.21684448
    %v135 = vadd.f32 %v130, %v134
    %v136 = vld [vmem:[#allocation13] sm:$0xff]
    %v137 = vsub.f32 %v136, %v111
    %v138 = vand.u32 2147483647, %v137
    %v139 = vmul.f32 %v138, 0.2710556
    %v140 = vadd.f32 %v135, %v139
    %v141 = vld [vmem:[#allocation2] ss:$2 sm:$0x3]
    %v143 = vlaneseq
    %v144 = vshrl.u32 %v143, 7
    %v145 = vsub.s32 0, %v144
    %v146 = vrot.slane %v141, %v145
    %v147 = vlaneseq
    %v148 = vshrl.u32 %v147, 7
    %v149 = vsub.s32 1, %v148
    %v150 = vrot.slane %v141, %v149
    %v151 = vcombine.low %v146, %v150
    %v153 = vmul.f32 %v140, %v151
    %154 = vst [vmem:[#allocation14] sm:$0x33] %v153
    %s155 = scalar_lea.vmem [#allocation2], 1
    %v156 = vld [vmem:[%s155] ss:$2 sm:$0x3]
    %v158 = vlaneseq
    %v159 = vshrl.u32 %v158, 7
    %v160 = vsub.s32 0, %v159
    %v161 = vrot.slane %v156, %v160
    %v162 = vlaneseq
    %v163 = vshrl.u32 %v162, 7
    %v164 = vsub.s32 1, %v163
    %v165 = vrot.slane %v156, %v164
    %v166 = vcombine.low %v161, %v165
    %v167 = vrot.slane %v166, 6
    %v169 = vmul.f32 %v140, %v167
    %170 = vst [vmem:[#allocation14] sm:$0xcc] %v169
    // Predicated region
    $region62: #{tpu_custom_call.1} parent=1 // pred_check
      _
    $region63: #{tpu_custom_call.1} parent=1 // pred_check_branch
      %172 = sbr.rel (0) target = $region65
    $region64: #{tpu_custom_call.1} parent=1 // pred_region
      %s174 = ssub.s32 128, 128
      %175 = vsyncadd [#allocation4], %s174
      %s177 = sshll.u32 [#allocation14], 4
      %s178 = int_to_ptr.vmem [resolvable:$true] %s177
      %180 = dma.vmem_to_hbm [thread:$0]  %s178, 128, %s8, [#allocation4]
    $region65: #{tpu_custom_call.1} parent=1 // pred_fallthru
      _
    // Predicated region
    $region66: #{tpu_custom_call.1} parent=1 // pred_check
      _
    $region67: #{tpu_custom_call.1} parent=1 // pred_check_branch
      %182 = sbr.rel (0) target = $region69
    $region68: #{tpu_custom_call.1} parent=1 // pred_region
      %183 = dma.done [#allocation4], 128
    $region69: #{tpu_custom_call.1} parent=1 // pred_fallthru
      _
    %184 = vsyncpa [#allocation3], 1
    %185 = vsyncpa [#allocation6], 1
    %186 = vsyncpa [#allocation9], 1
    %187 = vsyncpa [#allocation12], 1
    %188 = vsyncpa [#allocation4], 1

</llo_original>
